<compile_context>
chip_gen: v6e
topology: v6e:2x2x1
jax: 0.10.0
libtpu: 0.0.40
codegen_flags: <defaults>
</compile_context>

<pallas_src>
import jax
import jax.numpy as jnp
from jax.experimental import pallas as pl
from jax.experimental.pallas import tpu as pltpu

INPUT_FEATURES = 1
LAYER1_NEURONS = 4
LAYER2_NEURONS = 4
OUTPUT_NEURONS = 1

# Packed-parameter layout (flat f32 array in SMEM).
W1_OFF = 0                                   # w1[0, j]        -> 4
B1_OFF = W1_OFF + INPUT_FEATURES * LAYER1_NEURONS   # b1[j]    -> 4
W2_OFF = B1_OFF + LAYER1_NEURONS             # w2[j, k] row-major -> 16
B2_OFF = W2_OFF + LAYER1_NEURONS * LAYER2_NEURONS   # b2[k]    -> 4
W3_OFF = B2_OFF + LAYER2_NEURONS             # w3[k, 0]        -> 4
B3_OFF = W3_OFF + LAYER2_NEURONS * OUTPUT_NEURONS   # b3       -> 1
PARAMS_LEN = B3_OFF + OUTPUT_NEURONS         # = 33

LANES = 128
SUBLANES = 8


def mlp_kernel(p_ref, x_ref, o_ref):
    # x_ref: (block_rows, 128) f32 tile, one batch sample per lane element.
    # p_ref: (33,) f32 in SMEM — scalar loads, broadcast into VPU ops.
    x = x_ref[...].astype(jnp.float32)

    # Layer 1: h1_j = tanh(w1_j * x + b1_j)          (4 FMAs + 4 tanh / element)
    h1 = [
        jnp.tanh(p_ref[W1_OFF + j] * x + p_ref[B1_OFF + j])
        for j in range(LAYER1_NEURONS)
    ]

    # Layer 2: h2_k = tanh(sum_j w2[j,k]*h1_j + b2_k) (16 FMAs + 4 tanh / element)
    h2 = []
    for k in range(LAYER2_NEURONS):
        acc = p_ref[W2_OFF + 0 * LAYER2_NEURONS + k] * h1[0]
        for j in range(1, LAYER1_NEURONS):
            acc = acc + p_ref[W2_OFF + j * LAYER2_NEURONS + k] * h1[j]
        h2.append(jnp.tanh(acc + p_ref[B2_OFF + k]))

    # Output layer: y = sum_k w3_k*h2_k + b3          (4 FMAs / element)
    out = p_ref[W3_OFF + 0] * h2[0]
    for k in range(1, LAYER2_NEURONS):
        out = out + p_ref[W3_OFF + k] * h2[k]
    out = out + p_ref[B3_OFF]

    o_ref[...] = out.astype(o_ref.dtype)


def pack_params(params):
    return jnp.concatenate(
        [
            params["w1"].reshape(-1),
            params["b1"].reshape(-1),
            params["w2"].reshape(-1),
            params["b2"].reshape(-1),
            params["w3"].reshape(-1),
            params["b3"].reshape(-1),
        ]
    ).astype(jnp.float32)


def neural_network0_forward(x, params, *, block_rows=1024):
    """x: (B, 1) float32. params: dict of (in, out) weights and flat biases."""
    B = x.shape[0]
    assert x.shape == (B, INPUT_FEATURES)
    packed = pack_params(params)
    assert packed.shape == (PARAMS_LEN,)

    # Lane-dense layout: batch fills lanes (last dim = 128) and sublanes (rows).
    rows = pl.cdiv(B, LANES)
    rows_aligned = ((rows + SUBLANES - 1) // SUBLANES) * SUBLANES
    block_rows = max(SUBLANES, min(block_rows, rows_aligned))
    block_rows = (block_rows // SUBLANES) * SUBLANES
    rows_padded = ((rows_aligned + block_rows - 1) // block_rows) * block_rows
    b_padded = rows_padded * LANES

    x_flat = x.reshape(-1)
    if b_padded != B:
        x_flat = jnp.pad(x_flat, (0, b_padded - B))
    x2d = x_flat.reshape(rows_padded, LANES)

    grid = (rows_padded // block_rows,)

    out2d = pl.pallas_call(
        mlp_kernel,
        out_shape=jax.ShapeDtypeStruct((rows_padded, LANES), x.dtype),
        grid=grid,
        in_specs=[
            # All 33 parameters live in SMEM (no padded/double-buffered VMEM tiles).
            pl.BlockSpec(memory_space=pltpu.MemorySpace.SMEM),
            pl.BlockSpec((block_rows, LANES), lambda i: (i, 0)),
        ],
        out_specs=pl.BlockSpec((block_rows, LANES), lambda i: (i, 0)),
        compiler_params=pltpu.CompilerParams(
            dimension_semantics=("parallel",),
        ),
    )(packed, x2d)

    return out2d.reshape(-1)[:B].reshape(B, OUTPUT_NEURONS)


def init_params(key):
    """Deterministic init mirroring nn.Linear shapes; weights stored as (in, out)."""
    k1, k2, k3, k4, k5, k6 = jax.random.split(key, 6)

    def u(k, shape, fan_in):
        bound = 1.0 / jnp.sqrt(fan_in)
        return jax.random.uniform(k, shape, jnp.float32, -bound, bound)

    return {
        "w1": u(k1, (INPUT_FEATURES, LAYER1_NEURONS), INPUT_FEATURES),
        "b1": u(k2, (LAYER1_NEURONS,), INPUT_FEATURES),
        "w2": u(k3, (LAYER1_NEURONS, LAYER2_NEURONS), LAYER1_NEURONS),
        "b2": u(k4, (LAYER2_NEURONS,), LAYER1_NEURONS),
        "w3": u(k5, (LAYER2_NEURONS, OUTPUT_NEURONS), LAYER2_NEURONS),
        "b3": u(k6, (OUTPUT_NEURONS,), LAYER2_NEURONS),
    }


def reference_forward(x, p):
    h1 = jnp.tanh(x @ p["w1"] + p["b1"])
    h2 = jnp.tanh(h1 @ p["w2"] + p["b2"])
    return h2 @ p["w3"] + p["b3"]


if __name__ == "__main__":
    key = jax.random.PRNGKey(0)
    kx, kp = jax.random.split(key)
    params = init_params(kp)

    # Small batch, deliberately NOT a multiple of 128 to exercise padding/tail.
    B = 300
    x = jax.random.normal(kx, (B, INPUT_FEATURES), jnp.float32)
    out = jax.block_until_ready(neural_network0_forward(x, params))
    ref = reference_forward(x, params)
    assert out.shape == (B, OUTPUT_NEURONS)
    assert jnp.allclose(out, ref, atol=1e-5, rtol=1e-5), "mismatch vs reference (B=300)"

    # Multi-grid-step path (small block to force several grid iterations).
    B2 = 3000
    x2 = jax.random.normal(kx, (B2, INPUT_FEATURES), jnp.float32)
    out2 = jax.block_until_ready(
        neural_network0_forward(x2, params, block_rows=8)
    )
    ref2 = reference_forward(x2, params)
    assert out2.shape == (B2, OUTPUT_NEURONS)
    assert jnp.allclose(out2, ref2, atol=1e-5, rtol=1e-5), "mismatch vs reference (B=3000)"

    print("KERNEL_OK")
</pallas_src>

<mosaic_0001>
module attributes {stable_mosaic.version = 11 : i64} {
  func.func @mlp_kernel(%arg0: i32, %arg1: memref<33xf32, #tpu.memory_space<smem>>, %arg2: memref<8x128xf32, #tpu.memory_space<vmem>>, %arg3: memref<8x128xf32, #tpu.memory_space<vmem>>) attributes {dimension_semantics = [#tpu.dimension_semantics<parallel>], iteration_bounds = array<i64: 1>, scalar_prefetch = 0 : i64, scratch_operands = 0 : i64, tpu.core_type = #tpu.core_type<tc>, window_params = [{transform_indices = @transform_0, window_bounds = array<i64: 33>}, {transform_indices = @transform_1, window_bounds = array<i64: 8, 128>}, {transform_indices = @transform_2, window_bounds = array<i64: 8, 128>}]} {
    %c0 = arith.constant 0 : index
    %c0_0 = arith.constant 0 : index
    %0 = vector.load %arg2[%c0, %c0_0] : memref<8x128xf32, #tpu.memory_space<vmem>>, vector<8x128xf32>
    %c0_1 = arith.constant 0 : index
    %1 = memref.load %arg1[%c0_1] : memref<33xf32, #tpu.memory_space<smem>>
    %2 = vector.broadcast %1 : f32 to vector<8x128xf32>
    %3 = arith.mulf %2, %0 : vector<8x128xf32>
    %c4 = arith.constant 4 : index
    %4 = memref.load %arg1[%c4] : memref<33xf32, #tpu.memory_space<smem>>
    %5 = vector.broadcast %4 : f32 to vector<8x128xf32>
    %6 = arith.addf %3, %5 : vector<8x128xf32>
    %7 = math.tanh %6 : vector<8x128xf32>
    %c1 = arith.constant 1 : index
    %8 = memref.load %arg1[%c1] : memref<33xf32, #tpu.memory_space<smem>>
    %9 = vector.broadcast %8 : f32 to vector<8x128xf32>
    %10 = arith.mulf %9, %0 : vector<8x128xf32>
    %c5 = arith.constant 5 : index
    %11 = memref.load %arg1[%c5] : memref<33xf32, #tpu.memory_space<smem>>
    %12 = vector.broadcast %11 : f32 to vector<8x128xf32>
    %13 = arith.addf %10, %12 : vector<8x128xf32>
    %14 = math.tanh %13 : vector<8x128xf32>
    %c2 = arith.constant 2 : index
    %15 = memref.load %arg1[%c2] : memref<33xf32, #tpu.memory_space<smem>>
    %16 = vector.broadcast %15 : f32 to vector<8x128xf32>
    %17 = arith.mulf %16, %0 : vector<8x128xf32>
    %c6 = arith.constant 6 : index
    %18 = memref.load %arg1[%c6] : memref<33xf32, #tpu.memory_space<smem>>
    %19 = vector.broadcast %18 : f32 to vector<8x128xf32>
    %20 = arith.addf %17, %19 : vector<8x128xf32>
    %21 = math.tanh %20 : vector<8x128xf32>
    %c3 = arith.constant 3 : index
    %22 = memref.load %arg1[%c3] : memref<33xf32, #tpu.memory_space<smem>>
    %23 = vector.broadcast %22 : f32 to vector<8x128xf32>
    %24 = arith.mulf %23, %0 : vector<8x128xf32>
    %c7 = arith.constant 7 : index
    %25 = memref.load %arg1[%c7] : memref<33xf32, #tpu.memory_space<smem>>
    %26 = vector.broadcast %25 : f32 to vector<8x128xf32>
    %27 = arith.addf %24, %26 : vector<8x128xf32>
    %28 = math.tanh %27 : vector<8x128xf32>
    %c8 = arith.constant 8 : index
    %29 = memref.load %arg1[%c8] : memref<33xf32, #tpu.memory_space<smem>>
    %30 = vector.broadcast %29 : f32 to vector<8x128xf32>
    %31 = arith.mulf %30, %7 : vector<8x128xf32>
    %c12 = arith.constant 12 : index
    %32 = memref.load %arg1[%c12] : memref<33xf32, #tpu.memory_space<smem>>
    %33 = vector.broadcast %32 : f32 to vector<8x128xf32>
    %34 = arith.mulf %33, %14 : vector<8x128xf32>
    %35 = arith.addf %31, %34 : vector<8x128xf32>
    %c16 = arith.constant 16 : index
    %36 = memref.load %arg1[%c16] : memref<33xf32, #tpu.memory_space<smem>>
    %37 = vector.broadcast %36 : f32 to vector<8x128xf32>
    %38 = arith.mulf %37, %21 : vector<8x128xf32>
    %39 = arith.addf %35, %38 : vector<8x128xf32>
    %c20 = arith.constant 20 : index
    %40 = memref.load %arg1[%c20] : memref<33xf32, #tpu.memory_space<smem>>
    %41 = vector.broadcast %40 : f32 to vector<8x128xf32>
    %42 = arith.mulf %41, %28 : vector<8x128xf32>
    %43 = arith.addf %39, %42 : vector<8x128xf32>
    %c24 = arith.constant 24 : index
    %44 = memref.load %arg1[%c24] : memref<33xf32, #tpu.memory_space<smem>>
    %45 = vector.broadcast %44 : f32 to vector<8x128xf32>
    %46 = arith.addf %43, %45 : vector<8x128xf32>
    %47 = math.tanh %46 : vector<8x128xf32>
    %c9 = arith.constant 9 : index
    %48 = memref.load %arg1[%c9] : memref<33xf32, #tpu.memory_space<smem>>
    %49 = vector.broadcast %48 : f32 to vector<8x128xf32>
    %50 = arith.mulf %49, %7 : vector<8x128xf32>
    %c13 = arith.constant 13 : index
    %51 = memref.load %arg1[%c13] : memref<33xf32, #tpu.memory_space<smem>>
    %52 = vector.broadcast %51 : f32 to vector<8x128xf32>
    %53 = arith.mulf %52, %14 : vector<8x128xf32>
    %54 = arith.addf %50, %53 : vector<8x128xf32>
    %c17 = arith.constant 17 : index
    %55 = memref.load %arg1[%c17] : memref<33xf32, #tpu.memory_space<smem>>
    %56 = vector.broadcast %55 : f32 to vector<8x128xf32>
    %57 = arith.mulf %56, %21 : vector<8x128xf32>
    %58 = arith.addf %54, %57 : vector<8x128xf32>
    %c21 = arith.constant 21 : index
    %59 = memref.load %arg1[%c21] : memref<33xf32, #tpu.memory_space<smem>>
    %60 = vector.broadcast %59 : f32 to vector<8x128xf32>
    %61 = arith.mulf %60, %28 : vector<8x128xf32>
    %62 = arith.addf %58, %61 : vector<8x128xf32>
    %c25 = arith.constant 25 : index
    %63 = memref.load %arg1[%c25] : memref<33xf32, #tpu.memory_space<smem>>
    %64 = vector.broadcast %63 : f32 to vector<8x128xf32>
    %65 = arith.addf %62, %64 : vector<8x128xf32>
    %66 = math.tanh %65 : vector<8x128xf32>
    %c10 = arith.constant 10 : index
    %67 = memref.load %arg1[%c10] : memref<33xf32, #tpu.memory_space<smem>>
    %68 = vector.broadcast %67 : f32 to vector<8x128xf32>
    %69 = arith.mulf %68, %7 : vector<8x128xf32>
    %c14 = arith.constant 14 : index
    %70 = memref.load %arg1[%c14] : memref<33xf32, #tpu.memory_space<smem>>
    %71 = vector.broadcast %70 : f32 to vector<8x128xf32>
    %72 = arith.mulf %71, %14 : vector<8x128xf32>
    %73 = arith.addf %69, %72 : vector<8x128xf32>
    %c18 = arith.constant 18 : index
    %74 = memref.load %arg1[%c18] : memref<33xf32, #tpu.memory_space<smem>>
    %75 = vector.broadcast %74 : f32 to vector<8x128xf32>
    %76 = arith.mulf %75, %21 : vector<8x128xf32>
    %77 = arith.addf %73, %76 : vector<8x128xf32>
    %c22 = arith.constant 22 : index
    %78 = memref.load %arg1[%c22] : memref<33xf32, #tpu.memory_space<smem>>
    %79 = vector.broadcast %78 : f32 to vector<8x128xf32>
    %80 = arith.mulf %79, %28 : vector<8x128xf32>
    %81 = arith.addf %77, %80 : vector<8x128xf32>
    %c26 = arith.constant 26 : index
    %82 = memref.load %arg1[%c26] : memref<33xf32, #tpu.memory_space<smem>>
    %83 = vector.broadcast %82 : f32 to vector<8x128xf32>
    %84 = arith.addf %81, %83 : vector<8x128xf32>
    %85 = math.tanh %84 : vector<8x128xf32>
    %c11 = arith.constant 11 : index
    %86 = memref.load %arg1[%c11] : memref<33xf32, #tpu.memory_space<smem>>
    %87 = vector.broadcast %86 : f32 to vector<8x128xf32>
    %88 = arith.mulf %87, %7 : vector<8x128xf32>
    %c15 = arith.constant 15 : index
    %89 = memref.load %arg1[%c15] : memref<33xf32, #tpu.memory_space<smem>>
    %90 = vector.broadcast %89 : f32 to vector<8x128xf32>
    %91 = arith.mulf %90, %14 : vector<8x128xf32>
    %92 = arith.addf %88, %91 : vector<8x128xf32>
    %c19 = arith.constant 19 : index
    %93 = memref.load %arg1[%c19] : memref<33xf32, #tpu.memory_space<smem>>
    %94 = vector.broadcast %93 : f32 to vector<8x128xf32>
    %95 = arith.mulf %94, %21 : vector<8x128xf32>
    %96 = arith.addf %92, %95 : vector<8x128xf32>
    %c23 = arith.constant 23 : index
    %97 = memref.load %arg1[%c23] : memref<33xf32, #tpu.memory_space<smem>>
    %98 = vector.broadcast %97 : f32 to vector<8x128xf32>
    %99 = arith.mulf %98, %28 : vector<8x128xf32>
    %100 = arith.addf %96, %99 : vector<8x128xf32>
    %c27 = arith.constant 27 : index
    %101 = memref.load %arg1[%c27] : memref<33xf32, #tpu.memory_space<smem>>
    %102 = vector.broadcast %101 : f32 to vector<8x128xf32>
    %103 = arith.addf %100, %102 : vector<8x128xf32>
    %104 = math.tanh %103 : vector<8x128xf32>
    %c28 = arith.constant 28 : index
    %105 = memref.load %arg1[%c28] : memref<33xf32, #tpu.memory_space<smem>>
    %106 = vector.broadcast %105 : f32 to vector<8x128xf32>
    %107 = arith.mulf %106, %47 : vector<8x128xf32>
    %c29 = arith.constant 29 : index
    %108 = memref.load %arg1[%c29] : memref<33xf32, #tpu.memory_space<smem>>
    %109 = vector.broadcast %108 : f32 to vector<8x128xf32>
    %110 = arith.mulf %109, %66 : vector<8x128xf32>
    %111 = arith.addf %107, %110 : vector<8x128xf32>
    %c30 = arith.constant 30 : index
    %112 = memref.load %arg1[%c30] : memref<33xf32, #tpu.memory_space<smem>>
    %113 = vector.broadcast %112 : f32 to vector<8x128xf32>
    %114 = arith.mulf %113, %85 : vector<8x128xf32>
    %115 = arith.addf %111, %114 : vector<8x128xf32>
    %c31 = arith.constant 31 : index
    %116 = memref.load %arg1[%c31] : memref<33xf32, #tpu.memory_space<smem>>
    %117 = vector.broadcast %116 : f32 to vector<8x128xf32>
    %118 = arith.mulf %117, %104 : vector<8x128xf32>
    %119 = arith.addf %115, %118 : vector<8x128xf32>
    %c32 = arith.constant 32 : index
    %120 = memref.load %arg1[%c32] : memref<33xf32, #tpu.memory_space<smem>>
    %121 = vector.broadcast %120 : f32 to vector<8x128xf32>
    %122 = arith.addf %119, %121 : vector<8x128xf32>
    %c0_2 = arith.constant 0 : index
    %c0_3 = arith.constant 0 : index
    %123 = vector.load %arg3[%c0_2, %c0_3] : memref<8x128xf32, #tpu.memory_space<vmem>>, vector<8x128xf32>
    tpu.vector_store %arg3[%c0_2, %c0_3], %122 {strides = array<i32>} : memref<8x128xf32, #tpu.memory_space<vmem>>, vector<8x128xf32>,
    return
  }
  func.func @transform_0(%arg0: i32) -> i32 {
    %c0_i32 = arith.constant 0 : i32
    %c0_i32_0 = arith.constant 0 : i32
    return %c0_i32 : i32
  }
  func.func @transform_1(%arg0: i32) -> (i32, i32) {
    %c0_i32 = arith.constant 0 : i32
    %c0_i32_0 = arith.constant 0 : i32
    return %arg0, %c0_i32 : i32, i32
  }
  func.func @transform_2(%arg0: i32) -> (i32, i32) {
    %c0_i32 = arith.constant 0 : i32
    %c0_i32_0 = arith.constant 0 : i32
    return %arg0, %c0_i32 : i32, i32
  }
}

</mosaic_0001>

<llo_original>
// kernel: tpu_custom_call.1
$region0: #{tpu_custom_call.1}
  #allocation0 [shape = 'u32[]', space=smem, size = 0x4, offset = 0x4, fixed_abs, tag = 'smem constant byte address 0x4 - core index']
  #allocation1 [shape = 'u32[144,128]{1,0:T(1,128)}', space=vmem, size = 0x12000, scoped, tag = 'internal scratch']
  %s0 = inlined_call_operand.hbm [shape: f32[33], index: 0, kind: input, shape index: {}]
  %s1 = inlined_call_operand.hbm [shape: f32[8,128], index: 1, kind: input, shape index: {}]
  %s2 = inlined_call_operand.hbm [shape: f32[8,128], index: 2, kind: output, shape index: {}]
  %s3 = sld [smem:[#allocation0]]
  $region26: #{tpu_custom_call.1} parent=0
    _
  %s5 = ssub.s32 1, %s3
  %s6 = scalar_select 0, %s5, %s3
  $region1: #{tpu_custom_call.1} parent=0
    #allocation2 [shape = 'u8[512]{0}', space=smem, size = 0x200, scoped, tag = 'input window, operand 0, single buffered']
    #allocation3 [shape = 's32[1]{0}', space=sflag, size = 0x4, scoped, tag = 'scoped memory for tpu_custom_call.1']
    #allocation4 [shape = 's32[1]{0}', space=sflag, size = 0x4, scoped, tag = 'scoped memory for tpu_custom_call.1']
    #allocation5 [shape = 's32[1]{0}', space=sflag, size = 0x4, scoped, tag = 'scoped memory for tpu_custom_call.1']
    #allocation6 [shape = 'u8[4096]{0}', space=vmem, size = 0x1000, scoped, tag = 'input window, operand 1, single buffered']
    #allocation7 [shape = 'u8[4096]{0}', space=vmem, size = 0x1000, scoped, tag = 'output window, operand 0, single buffered']
    %7 = vsyncpa [#allocation5], 0
    %8 = vsyncpa [#allocation3], 0
    %9 = vsyncpa [#allocation4], 0
    // Predicated region
    $region2: #{tpu_custom_call.1} parent=1 // pred_check
      _
    $region3: #{tpu_custom_call.1} parent=1 // pred_check_branch
      %11 = sbr.rel (0) target = $region5
    $region4: #{tpu_custom_call.1} parent=1 // pred_region
      %s13 = ssub.s32 16, 16
      %14 = vsyncadd [#allocation5], %s13
      %17 = dma.hbm_to_smem %s0, 16, [#allocation2], [#allocation5]
    $region5: #{tpu_custom_call.1} parent=1 // pred_fallthru
      _
    // Predicated region
    $region6: #{tpu_custom_call.1} parent=1 // pred_check
      _
    $region7: #{tpu_custom_call.1} parent=1 // pred_check_branch
      %19 = sbr.rel (0) target = $region9
    $region8: #{tpu_custom_call.1} parent=1 // pred_region
      %s21 = ssub.s32 128, 128
      %22 = vsyncadd [#allocation3], %s21
      %s24 = sshll.u32 [#allocation6], 4
      %s25 = int_to_ptr.vmem [resolvable:$true] %s24
      %27 = dma.hbm_to_vmem [thread:$0]  %s1, 128, %s25, [#allocation3]
    $region9: #{tpu_custom_call.1} parent=1 // pred_fallthru
      _
    // Predicated region
    $region10: #{tpu_custom_call.1} parent=1 // pred_check
      _
    $region11: #{tpu_custom_call.1} parent=1 // pred_check_branch
      %29 = sbr.rel (0) target = $region13
    $region12: #{tpu_custom_call.1} parent=1 // pred_region
      %30 = dma.done [#allocation5], 16
    $region13: #{tpu_custom_call.1} parent=1 // pred_fallthru
      _
    // Predicated region
    $region14: #{tpu_custom_call.1} parent=1 // pred_check
      _
    $region15: #{tpu_custom_call.1} parent=1 // pred_check_branch
      %32 = sbr.rel (0) target = $region17
    $region16: #{tpu_custom_call.1} parent=1 // pred_region
      %33 = dma.done [#allocation3], 128
    $region17: #{tpu_custom_call.1} parent=1 // pred_fallthru
      _
    %34 = sfence
    %v35 = vld [vmem:[#allocation6] sm:$0xff]
    %s36 = sld [smem:[#allocation2]]
    %v37 = vstv %s36
    %v38 = vmul.f32 %v37, %v35
    %s39 = sld [smem:[#allocation2 + $0x4]]
    %v40 = vstv %s39
    %v41 = vadd.f32 %v38, %v40
    %v42 = vtanh.pop %v41
    %s43 = sld [smem:[#allocation2 + $0x1]]
    %v44 = vstv %s43
    %v45 = vmul.f32 %v44, %v35
    %s46 = sld [smem:[#allocation2 + $0x5]]
    %v47 = vstv %s46
    %v48 = vadd.f32 %v45, %v47
    %v49 = vtanh.pop %v48
    %s50 = sld [smem:[#allocation2 + $0x2]]
    %v51 = vstv %s50
    %v52 = vmul.f32 %v51, %v35
    %s53 = sld [smem:[#allocation2 + $0x6]]
    %v54 = vstv %s53
    %v55 = vadd.f32 %v52, %v54
    %v56 = vtanh.pop %v55
    %s57 = sld [smem:[#allocation2 + $0x3]]
    %v58 = vstv %s57
    %v59 = vmul.f32 %v58, %v35
    %s60 = sld [smem:[#allocation2 + $0x7]]
    %v61 = vstv %s60
    %v62 = vadd.f32 %v59, %v61
    %v63 = vtanh.pop %v62
    %s64 = sld [smem:[#allocation2 + $0x8]]
    %v65 = vstv %s64
    %v66 = vmul.f32 %v65, %v42
    %s67 = sld [smem:[#allocation2 + $0xc]]
    %v68 = vstv %s67
    %v69 = vmul.f32 %v68, %v49
    %v70 = vadd.f32 %v66, %v69
    %s71 = sld [smem:[#allocation2 + $0x10]]
    %v72 = vstv %s71
    %v73 = vmul.f32 %v72, %v56
    %v74 = vadd.f32 %v70, %v73
    %s75 = sld [smem:[#allocation2 + $0x14]]
    %v76 = vstv %s75
    %v77 = vmul.f32 %v76, %v63
    %v78 = vadd.f32 %v74, %v77
    %s79 = sld [smem:[#allocation2 + $0x18]]
    %v80 = vstv %s79
    %v81 = vadd.f32 %v78, %v80
    %v82 = vtanh.pop %v81
    %s83 = sld [smem:[#allocation2 + $0x9]]
    %v84 = vstv %s83
    %v85 = vmul.f32 %v84, %v42
    %s86 = sld [smem:[#allocation2 + $0xd]]
    %v87 = vstv %s86
    %v88 = vmul.f32 %v87, %v49
    %v89 = vadd.f32 %v85, %v88
    %s90 = sld [smem:[#allocation2 + $0x11]]
    %v91 = vstv %s90
    %v92 = vmul.f32 %v91, %v56
    %v93 = vadd.f32 %v89, %v92
    %s94 = sld [smem:[#allocation2 + $0x15]]
    %v95 = vstv %s94
    %v96 = vmul.f32 %v95, %v63
    %v97 = vadd.f32 %v93, %v96
    %s98 = sld [smem:[#allocation2 + $0x19]]
    %v99 = vstv %s98
    %v100 = vadd.f32 %v97, %v99
    %v101 = vtanh.pop %v100
    %s102 = sld [smem:[#allocation2 + $0xa]]
    %v103 = vstv %s102
    %v104 = vmul.f32 %v103, %v42
    %s105 = sld [smem:[#allocation2 + $0xe]]
    %v106 = vstv %s105
    %v107 = vmul.f32 %v106, %v49
    %v108 = vadd.f32 %v104, %v107
    %s109 = sld [smem:[#allocation2 + $0x12]]
    %v110 = vstv %s109
    %v111 = vmul.f32 %v110, %v56
    %v112 = vadd.f32 %v108, %v111
    %s113 = sld [smem:[#allocation2 + $0x16]]
    %v114 = vstv %s113
    %v115 = vmul.f32 %v114, %v63
    %v116 = vadd.f32 %v112, %v115
    %s117 = sld [smem:[#allocation2 + $0x1a]]
    %v118 = vstv %s117
    %v119 = vadd.f32 %v116, %v118
    %v120 = vtanh.pop %v119
    %s121 = sld [smem:[#allocation2 + $0xb]]
    %v122 = vstv %s121
    %v123 = vmul.f32 %v122, %v42
    %s124 = sld [smem:[#allocation2 + $0xf]]
    %v125 = vstv %s124
    %v126 = vmul.f32 %v125, %v49
    %v127 = vadd.f32 %v123, %v126
    %s128 = sld [smem:[#allocation2 + $0x13]]
    %v129 = vstv %s128
    %v130 = vmul.f32 %v129, %v56
    %v131 = vadd.f32 %v127, %v130
    %s132 = sld [smem:[#allocation2 + $0x17]]
    %v133 = vstv %s132
    %v134 = vmul.f32 %v133, %v63
    %v135 = vadd.f32 %v131, %v134
    %s136 = sld [smem:[#allocation2 + $0x1b]]
    %v137 = vstv %s136
    %v138 = vadd.f32 %v135, %v137
    %v139 = vtanh.pop %v138
    %s140 = sld [smem:[#allocation2 + $0x1c]]
    %v141 = vstv %s140
    %v142 = vmul.f32 %v141, %v82
    %s143 = sld [smem:[#allocation2 + $0x1d]]
    %v144 = vstv %s143
    %v145 = vmul.f32 %v144, %v101
    %v146 = vadd.f32 %v142, %v145
    %s147 = sld [smem:[#allocation2 + $0x1e]]
    %v148 = vstv %s147
    %v149 = vmul.f32 %v148, %v120
    %v150 = vadd.f32 %v146, %v149
    %s151 = sld [smem:[#allocation2 + $0x1f]]
    %v152 = vstv %s151
    %v153 = vmul.f32 %v152, %v139
    %v154 = vadd.f32 %v150, %v153
    %s155 = sld [smem:[#allocation2 + $0x20]]
    %v156 = vstv %s155
    %v157 = vadd.f32 %v154, %v156
    %158 = vst [vmem:[#allocation7] sm:$0xff] %v157
    // Predicated region
    $region18: #{tpu_custom_call.1} parent=1 // pred_check
      _
    $region19: #{tpu_custom_call.1} parent=1 // pred_check_branch
      %160 = sbr.rel (0) target = $region21
    $region20: #{tpu_custom_call.1} parent=1 // pred_region
      %s162 = ssub.s32 128, 128
      %163 = vsyncadd [#allocation4], %s162
      %s165 = sshll.u32 [#allocation7], 4
      %s166 = int_to_ptr.vmem [resolvable:$true] %s165
      %168 = dma.vmem_to_hbm [thread:$0]  %s166, 128, %s2, [#allocation4]
    $region21: #{tpu_custom_call.1} parent=1 // pred_fallthru
      _
    // Predicated region
    $region22: #{tpu_custom_call.1} parent=1 // pred_check
      _
    $region23: #{tpu_custom_call.1} parent=1 // pred_check_branch
      %170 = sbr.rel (0) target = $region25
    $region24: #{tpu_custom_call.1} parent=1 // pred_region
      %171 = dma.done [#allocation4], 128
    $region25: #{tpu_custom_call.1} parent=1 // pred_fallthru
      _
    %172 = vsyncpa [#allocation3], 1
    %173 = vsyncpa [#allocation4], 1
    %174 = vsyncpa [#allocation5], 1

</llo_original>
